<compile_context>
chip_gen: v7x
topology: tpu7x:2x2x1
jax: 0.10.0
libtpu: 0.0.40
codegen_flags: <defaults>
</compile_context>

<pallas_src>
import functools
import math

import jax
import jax.numpy as jnp
from jax.experimental import pallas as pl
from jax.experimental.pallas import tpu as pltpu


_VMEM_CAP = 48 << 20  # stay well under v7x's 64 MiB per-TC VMEM


def _round_up(x, m):
    return (x + m - 1) // m * m


def _vmem_limit(est_bytes):
    return int(min(max(est_bytes, 16 << 20), _VMEM_CAP))


# ---------------------------------------------------------------------------
# Linear: y = x @ W^T + b   (row-tiled; weight passed pre-transposed as (K, N))
# ---------------------------------------------------------------------------
def _linear_kernel(x_ref, w_ref, b_ref, o_ref):
    # Native-dtype MXU operands; f32 accumulation and bias add only.
    acc = jnp.dot(x_ref[...], w_ref[...], preferred_element_type=jnp.float32)
    o_ref[...] = (acc + b_ref[...].astype(jnp.float32)).astype(o_ref.dtype)


def _linear(x2, w_t, b, *, row_tile=512):
    """x2: (R, K), w_t: (K, N) = W.T, b: (N,) -> (R, N)."""
    R, K = x2.shape
    N = w_t.shape[1]
    itemsize = jnp.dtype(x2.dtype).itemsize
    w_bytes = (K * N + N) * jnp.dtype(w_t.dtype).itemsize

    tm = min(int(row_tile), _round_up(R, 8))
    # shrink the row tile if the (double-buffered) working set would blow the budget
    while tm > 64 and 2 * tm * (K + N) * itemsize + 2 * w_bytes + (4 << 20) > _VMEM_CAP:
        tm //= 2
    tm = max(8, _round_up(tm, 8))

    est = 2 * tm * (K + N) * itemsize + 2 * w_bytes + (4 << 20)
    b2 = b.reshape(1, N)

    return pl.pallas_call(
        _linear_kernel,
        out_shape=jax.ShapeDtypeStruct((R, N), x2.dtype),
        grid_spec=pltpu.PrefetchScalarGridSpec(
            num_scalar_prefetch=0,
            grid=(pl.cdiv(R, tm),),                      # ragged last block handled by Pallas
            in_specs=[
                pl.BlockSpec((tm, K), lambda i: (i, 0)),
                pl.BlockSpec((K, N), lambda i: (0, 0)),  # constant block -> no re-fetch
                pl.BlockSpec((1, N), lambda i: (0, 0)),
            ],
            out_specs=pl.BlockSpec((tm, N), lambda i: (i, 0)),
        ),
        compiler_params=pltpu.CompilerParams(
            dimension_semantics=("parallel",),
            vmem_limit_bytes=_vmem_limit(est),
        ),
    )(x2, w_t, b2)


# ---------------------------------------------------------------------------
# Scaled dot-product attention, tiled over (batch, q-rows).
# Heads are feature-column slices; per-head contexts are concatenated and the
# (Tq, d_model) tile is written with one lane-dense store (fuses the PyTorch
# transpose(1,2).view(...) step).
# ---------------------------------------------------------------------------
def _attn_kernel(*refs, h, d_k, has_mask):
    if has_mask:
        q_ref, k_ref, v_ref, m_ref, o_ref = refs
    else:
        q_ref, k_ref, v_ref, o_ref = refs

    q = q_ref[...]                                   # (Tq, D)  caller dtype
    k = k_ref[...]                                   # (Sk, D)
    v = v_ref[...]                                   # (Sk, D)

    if has_mask:
        # mask -> additive bias, computed ONCE per tile (hoisted out of the head loop)
        bias = jnp.where(m_ref[...] == 0.0, -1e9, 0.0).astype(jnp.float32)   # (1|Tq, Sk)

    scale = 1.0 / math.sqrt(d_k)
    ctxs = []
    for hh in range(h):                              # small static head loop
        lo = hh * d_k
        # scores = q_h @ k_h^T / sqrt(d_k)   (native-dtype MXU operands, f32 accumulate)
        s = jax.lax.dot_general(q[:, lo:lo + d_k], k[:, lo:lo + d_k],
                                (((1,), (1,)), ((), ())),
                                preferred_element_type=jnp.float32) * scale
        if has_mask:
            s = s + bias                             # masked_fill(mask==0, -1e9)

        s_max = jnp.max(s, axis=-1, keepdims=True)
        p = jnp.exp(s - s_max)
        inv = pl.reciprocal(jnp.sum(p, axis=-1, keepdims=True), approx=True)  # EUP vrcp

        ctx = jax.lax.dot_general(p.astype(v.dtype), v[:, lo:lo + d_k],
                                  (((1,), (0,)), ((), ())),
                                  preferred_element_type=jnp.float32) * inv
        ctxs.append(ctx)

    # single lane-dense store of the concatenated heads
    o_ref[...] = jnp.concatenate(ctxs, axis=-1).astype(o_ref.dtype)


def _attention(q3, k3, v3, mask, *, h, q_tile=256):
    """q3: (B, Sq, D), k3/v3: (B, Sk, D). Returns concat-heads context (B, Sq, D)."""
    B, Sq, D = q3.shape
    Sk = k3.shape[1]
    d_k = D // h
    has_mask = mask is not None
    itemsize = jnp.dtype(q3.dtype).itemsize

    def est_bytes(t):
        # double-buffered q/out tiles + k/v key blocks + f32 score headroom
        return 2 * (2 * t * D + 2 * Sk * D) * itemsize + 2 * t * Sk * 4 + (8 << 20)

    tq = min(int(q_tile), _round_up(Sq, 8))
    while tq > 64 and est_bytes(tq) > _VMEM_CAP:
        tq //= 2
    tq = max(8, _round_up(tq, 8))

    in_specs = [
        pl.BlockSpec((None, tq, D), lambda b, qi: (b, qi, 0)),
        pl.BlockSpec((None, Sk, D), lambda b, qi: (b, 0, 0)),
        pl.BlockSpec((None, Sk, D), lambda b, qi: (b, 0, 0)),
    ]
    args = [q3, k3, v3]
    est = est_bytes(tq)
    if has_mask:
        mask = jnp.asarray(mask, jnp.float32)        # (B, 1, Sk) or (B, Sq, Sk); no broadcast
        if mask.shape[1] == 1:
            in_specs.append(pl.BlockSpec((None, 1, Sk), lambda b, qi: (b, 0, 0)))
            est += 2 * Sk * 4
        else:
            in_specs.append(pl.BlockSpec((None, tq, Sk), lambda b, qi: (b, qi, 0)))
            est += 2 * tq * Sk * 4
        args.append(mask)

    kernel = functools.partial(_attn_kernel, h=h, d_k=d_k, has_mask=has_mask)
    return pl.pallas_call(
        kernel,
        out_shape=jax.ShapeDtypeStruct((B, Sq, D), q3.dtype),
        grid_spec=pltpu.PrefetchScalarGridSpec(
            num_scalar_prefetch=0,
            grid=(B, pl.cdiv(Sq, tq)),
            in_specs=in_specs,
            out_specs=pl.BlockSpec((None, tq, D), lambda b, qi: (b, qi, 0)),
        ),
        compiler_params=pltpu.CompilerParams(
            dimension_semantics=("parallel", "parallel"),
            vmem_limit_bytes=_vmem_limit(est),
        ),
    )(*args)


# ---------------------------------------------------------------------------
# Full MultiHeadedAttention forward (self-attention projections)
# ---------------------------------------------------------------------------
def prepare_params(params):
    """One-time weight prep (outside the hot path): transpose PyTorch (out, in)
    weights to (in, out) and build the fused QKV weight/bias."""
    prep = {
        "wq_t": params["wq"].T, "wk_t": params["wk"].T, "wv_t": params["wv"].T,
        "wo_t": params["wo"].T,
        "bq": params["bq"], "bk": params["bk"], "bv": params["bv"], "bo": params["bo"],
    }
    prep["w_qkv_t"] = jnp.concatenate([prep["wq_t"], prep["wk_t"], prep["wv_t"]], axis=1)
    prep["b_qkv"] = jnp.concatenate([params["bq"], params["bk"], params["bv"]])
    return prep


def mha_forward(query, key, value, prep, *, h, mask=None, row_tile=512, q_tile=256):
    """prep: output of prepare_params (pre-transposed / fused weights)."""
    B, Sq, D = query.shape
    Sk = key.shape[1]
    assert D % h == 0

    if (query is key) and (key is value):
        # fused QKV projection: activation read once, one kernel launch
        qkv2 = _linear(query.reshape(-1, D), prep["w_qkv_t"], prep["b_qkv"], row_tile=row_tile)
        q2, k2, v2 = qkv2[:, :D], qkv2[:, D:2 * D], qkv2[:, 2 * D:]
    else:
        q2 = _linear(query.reshape(-1, D), prep["wq_t"], prep["bq"], row_tile=row_tile)
        k2 = _linear(key.reshape(-1, D), prep["wk_t"], prep["bk"], row_tile=row_tile)
        v2 = _linear(value.reshape(-1, D), prep["wv_t"], prep["bv"], row_tile=row_tile)

    ctx = _attention(q2.reshape(B, Sq, D), k2.reshape(B, Sk, D), v2.reshape(B, Sk, D),
                     mask, h=h, q_tile=q_tile)                     # (B, Sq, D), heads concat'd

    out = _linear(ctx.reshape(-1, D), prep["wo_t"], prep["bo"], row_tile=row_tile)
    return out.reshape(B, Sq, D)


# ---------------------------------------------------------------------------
# Pure-JAX reference (mirrors the PyTorch module, eval mode)
# ---------------------------------------------------------------------------
def _reference(query, key, value, params, h, mask):
    B, Sq, D = query.shape
    d_k = D // h

    def lin(x, w, b):
        return x @ w.T + b

    qh = lin(query, params["wq"], params["bq"]).reshape(B, -1, h, d_k).transpose(0, 2, 1, 3)
    kh = lin(key, params["wk"], params["bk"]).reshape(B, -1, h, d_k).transpose(0, 2, 1, 3)
    vh = lin(value, params["wv"], params["bv"]).reshape(B, -1, h, d_k).transpose(0, 2, 1, 3)

    scores = jnp.einsum("bhqd,bhkd->bhqk", qh, kh) / math.sqrt(d_k)
    if mask is not None:
        scores = jnp.where(mask[:, None] == 0, -1e9, scores)      # mask.unsqueeze(1)
    p = jax.nn.softmax(scores, axis=-1)
    ctx = jnp.einsum("bhqk,bhkd->bhqd", p, vh)
    ctx = ctx.transpose(0, 2, 1, 3).reshape(B, -1, D)
    return lin(ctx, params["wo"], params["bo"])


if __name__ == "__main__":
    key = jax.random.PRNGKey(0)
    batch, seq, d_model, heads = 2, 8, 32, 4

    ks = jax.random.split(key, 6)
    x = jax.random.normal(ks[0], (batch, seq, d_model), dtype=jnp.float32)

    def init_linear(k, fan_in, fan_out):
        kw, kb = jax.random.split(k)
        lim = 1.0 / math.sqrt(fan_in)
        w = jax.random.uniform(kw, (fan_out, fan_in), jnp.float32, -lim, lim)
        b = jax.random.uniform(kb, (fan_out,), jnp.float32, -lim, lim)
        return w, b

    wq, bq = init_linear(ks[1], d_model, d_model)
    wk, bk = init_linear(ks[2], d_model, d_model)
    wv, bv = init_linear(ks[3], d_model, d_model)
    wo, bo = init_linear(ks[4], d_model, d_model)
    params = dict(wq=wq, bq=bq, wk=wk, bk=bk, wv=wv, bv=bv, wo=wo, bo=bo)
    prep = prepare_params(params)

    # padding-style mask (B, 1, S): last two key positions of batch 1 masked out
    mask = jnp.ones((batch, 1, seq), jnp.float32).at[1, 0, seq - 2:].set(0.0)

    out = mha_forward(x, x, x, prep, h=heads, mask=mask)
    out = jax.block_until_ready(out)

    ref = _reference(x, x, x, params, heads, mask)
    err = float(jnp.max(jnp.abs(out - ref)))
    # approx EUP reciprocal in the softmax denominator introduces small, expected drift
    assert jnp.allclose(out, ref, atol=2e-3, rtol=2e-3), f"mismatch vs reference, max abs err={err}"

    print("KERNEL_OK")
</pallas_src>

<mosaic_0001>
module attributes {stable_mosaic.version = 11 : i64} {
  func.func @_linear_kernel(%arg0: i32, %arg1: memref<16x32xf32, #tpu.memory_space<vmem>>, %arg2: memref<32x96xf32, #tpu.memory_space<vmem>>, %arg3: memref<1x96xf32, #tpu.memory_space<vmem>>, %arg4: memref<16x96xf32, #tpu.memory_space<vmem>>) attributes {dimension_semantics = [#tpu.dimension_semantics<parallel>], iteration_bounds = array<i64: 1>, scalar_prefetch = 0 : i64, scratch_operands = 0 : i64, tpu.core_type = #tpu.core_type<tc>, window_params = [{transform_indices = @transform_0, window_bounds = array<i64: 16, 32>}, {pipeline_mode = #tpu.pipeline_mode<synchronous>, transform_indices = @transform_1, window_bounds = array<i64: 32, 96>}, {pipeline_mode = #tpu.pipeline_mode<synchronous>, transform_indices = @transform_2, window_bounds = array<i64: 1, 96>}, {transform_indices = @transform_3, window_bounds = array<i64: 16, 96>}]} {
    %c0 = arith.constant 0 : index
    %c0_0 = arith.constant 0 : index
    %0 = vector.load %arg1[%c0, %c0_0] : memref<16x32xf32, #tpu.memory_space<vmem>>, vector<16x32xf32>
    %c0_1 = arith.constant 0 : index
    %c0_2 = arith.constant 0 : index
    %1 = vector.load %arg2[%c0_1, %c0_2] : memref<32x96xf32, #tpu.memory_space<vmem>>, vector<32x96xf32>
    %cst = arith.constant dense<0.000000e+00> : vector<16x96xf32>
    %2 = tpu.matmul %0, %1, %cst {dimension_numbers = #tpu.dot_dimension_numbers<[1], [0], [0], [1], [0, 0, 1, 1], [], []>} : vector<16x32xf32>, vector<32x96xf32>, vector<16x96xf32> -> vector<16x96xf32>
    %c0_3 = arith.constant 0 : index
    %c0_4 = arith.constant 0 : index
    %3 = vector.load %arg3[%c0_3, %c0_4] : memref<1x96xf32, #tpu.memory_space<vmem>>, vector<1x96xf32>
    %4 = vector.broadcast %3 : vector<1x96xf32> to vector<16x96xf32>
    %5 = arith.addf %2, %4 : vector<16x96xf32>
    %c0_5 = arith.constant 0 : index
    %c0_6 = arith.constant 0 : index
    %6 = vector.load %arg4[%c0_5, %c0_6] : memref<16x96xf32, #tpu.memory_space<vmem>>, vector<16x96xf32>
    tpu.vector_store %arg4[%c0_5, %c0_6], %5 {strides = array<i32>} : memref<16x96xf32, #tpu.memory_space<vmem>>, vector<16x96xf32>,
    return
  }
  func.func @transform_0(%arg0: i32) -> (i32, i32) {
    %c0_i32 = arith.constant 0 : i32
    %c0_i32_0 = arith.constant 0 : i32
    return %arg0, %c0_i32 : i32, i32
  }
  func.func @transform_1(%arg0: i32) -> (i32, i32) {
    %c0_i32 = arith.constant 0 : i32
    %c0_i32_0 = arith.constant 0 : i32
    %c0_i32_1 = arith.constant 0 : i32
    return %c0_i32, %c0_i32_0 : i32, i32
  }
  func.func @transform_2(%arg0: i32) -> (i32, i32) {
    %c0_i32 = arith.constant 0 : i32
    %c0_i32_0 = arith.constant 0 : i32
    %c0_i32_1 = arith.constant 0 : i32
    return %c0_i32, %c0_i32_0 : i32, i32
  }
  func.func @transform_3(%arg0: i32) -> (i32, i32) {
    %c0_i32 = arith.constant 0 : i32
    %c0_i32_0 = arith.constant 0 : i32
    return %arg0, %c0_i32 : i32, i32
  }
}

</mosaic_0001>

<llo_original>
// kernel: tpu_custom_call.1
$region0: #{tpu_custom_call.1}
  #allocation0 [shape = 'u32[]', space=smem, size = 0x4, offset = 0x4, fixed_abs, tag = 'smem constant byte address 0x4 - core index']
  #allocation1 [shape = 'u32[144,128]{1,0:T(1,128)}', space=vmem, size = 0x12000, scoped, tag = 'internal scratch']
  %s0 = inlined_call_operand.hbm [shape: f32[16,32], index: 0, kind: input, shape index: {}]
  %s1 = inlined_call_operand.hbm [shape: f32[32,96], index: 1, kind: input, shape index: {}]
  %s2 = inlined_call_operand.vmem [shape: f32[1,96], index: 2, kind: input, shape index: {}]
  %s3 = inlined_call_operand.hbm [shape: f32[16,96], index: 3, kind: output, shape index: {}]
  %s4 = sld [smem:[#allocation0]]
  $region30: #{tpu_custom_call.1} parent=0
    _
  %s6 = ssub.s32 1, %s4
  %s7 = scalar_select 0, %s6, %s4
  $region1: #{tpu_custom_call.1} parent=0
    #allocation2 [shape = 'u8[8192]{0}', space=vmem, size = 0x2000, scoped, tag = 'input window, operand 0, single buffered']
    #allocation3 [shape = 's32[1]{0}', space=sflag, size = 0x4, scoped, tag = 'scoped memory for tpu_custom_call.1']
    #allocation4 [shape = 's32[1]{0}', space=sflag, size = 0x4, scoped, tag = 'scoped memory for tpu_custom_call.1']
    #allocation5 [shape = 'u8[16384]{0}', space=vmem, size = 0x4000, scoped, tag = 'input window, operand 1, single buffered']
    #allocation6 [shape = 's32[1]{0}', space=sflag, size = 0x4, scoped, tag = 'scoped memory for tpu_custom_call.1']
    #allocation7 [shape = 'u8[8192]{0}', space=vmem, size = 0x2000, scoped, tag = 'output window, operand 0, single buffered']
    %8 = vsyncpa [#allocation3], 0
    %9 = vsyncpa [#allocation6], 0
    %10 = vsyncpa [#allocation4], 0
    // Predicated region
    $region2: #{tpu_custom_call.1} parent=1 // pred_check
      _
    $region3: #{tpu_custom_call.1} parent=1 // pred_check_branch
      %12 = sbr.rel (0) target = $region5
    $region4: #{tpu_custom_call.1} parent=1 // pred_region
      %s14 = ssub.s32 256, 256
      %15 = vsyncadd [#allocation3], %s14
      %s16 = sshll.u32 [#allocation2], 4
      %s17 = int_to_ptr.vmem [resolvable:$true] %s16
      %22 = dma.hbm_to_vmem [thread:$0]  %s0, 256, %s17, [#allocation3], 128, 128, 8
    $region5: #{tpu_custom_call.1} parent=1 // pred_fallthru
      _
    // Predicated region
    $region6: #{tpu_custom_call.1} parent=1 // pred_check
      _
    $region7: #{tpu_custom_call.1} parent=1 // pred_check_branch
      %24 = sbr.rel (0) target = $region9
    $region8: #{tpu_custom_call.1} parent=1 // pred_region
      %s26 = ssub.s32 512, 512
      %27 = vsyncadd [#allocation6], %s26
      %s28 = sshll.u32 [#allocation5], 4
      %s29 = int_to_ptr.vmem [resolvable:$true] %s28
      %34 = dma.hbm_to_vmem [thread:$0]  %s1, 512, %s29, [#allocation6], 128, 128, 8
    $region9: #{tpu_custom_call.1} parent=1 // pred_fallthru
      _
    // Predicated region
    $region10: #{tpu_custom_call.1} parent=1 // pred_check
      _
    $region11: #{tpu_custom_call.1} parent=1 // pred_check_branch
      %36 = sbr.rel (0) target = $region13
    $region12: #{tpu_custom_call.1} parent=1 // pred_region
      _
    $region13: #{tpu_custom_call.1} parent=1 // pred_fallthru
      _
    // Predicated region
    $region14: #{tpu_custom_call.1} parent=1 // pred_check
      _
    $region15: #{tpu_custom_call.1} parent=1 // pred_check_branch
      %38 = sbr.rel (0) target = $region17
    $region16: #{tpu_custom_call.1} parent=1 // pred_region
      %39 = dma.done [#allocation3], 256
    $region17: #{tpu_custom_call.1} parent=1 // pred_fallthru
      _
    // Predicated region
    $region18: #{tpu_custom_call.1} parent=1 // pred_check
      _
    $region19: #{tpu_custom_call.1} parent=1 // pred_check_branch
      %41 = sbr.rel (0) target = $region21
    $region20: #{tpu_custom_call.1} parent=1 // pred_region
      %42 = dma.done [#allocation6], 512
    $region21: #{tpu_custom_call.1} parent=1 // pred_fallthru
      _
    %v43 = vld [vmem:[#allocation2] sm:$0xff]
    %v44 = vld [vmem:[#allocation2 + $0x8] sm:$0xff]
    %v45 = vld [vmem:[#allocation5] sm:$0xff]
    %v46 = vld [vmem:[#allocation5 + $0x8] sm:$0xff]
    %v47 = vld [vmem:[#allocation5 + $0x10] sm:$0xff]
    %v48 = vld [vmem:[#allocation5 + $0x18] sm:$0xff]
    %v49 = vld [vmem:[%s2] sm:$0x1]
    %v51 = vlaneseq
    %v52 = vshrl.u32 %v51, 7
    %v53 = vsub.s32 0, %v52
    %v54 = vrot.slane %v49, %v53
    %vm56 = vcmask 261120
    %v58 = vsel %vm56, %v43, 0
    %v61 = vsel %vm56, %v44, 0
    %63 = vmatprep.subr.mxu0 0.0
    %64 = vmatpush1.msra.mxu0 %v45
    %65 = vmatprep.subr.mxu0 0.0
    %66 = vmatpush1.msra.mxu0 %v46
    %67 = vmatprep.subr.mxu0 0.0
    %68 = vmatpush1.msra.mxu0 %v47
    %69 = vmatprep.subr.mxu0 0.0
    %70 = vmatpush1.msra.mxu0 %v48
    %71 = vmatprep.subr.mxu0 0.0
    %72 = vmatpush1.msra.mxu0 0.0
    %73 = vmatprep.subr.mxu0 0.0
    %74 = vmatpush1.msra.mxu0 0.0
    %75 = vmatprep.subr.mxu0 0.0
    %76 = vmatpush1.msra.mxu0 0.0
    %77 = vmatprep.subr.mxu0 0.0
    %78 = vmatpush1.msra.mxu0 0.0
    %79 = vmatprep.subr.mxu0 0.0
    %80 = vmatpush1.msra.mxu0 0.0
    %81 = vmatprep.subr.mxu0 0.0
    %82 = vmatpush1.msra.mxu0 0.0
    %83 = vmatprep.subr.mxu0 0.0
    %84 = vmatpush1.msra.mxu0 0.0
    %85 = vmatprep.subr.mxu0 0.0
    %86 = vmatpush1.msra.mxu0 0.0
    %87 = vmatprep.subr.mxu0 0.0
    %88 = vmatpush1.msra.mxu0 0.0
    %89 = vmatprep.subr.mxu0 0.0
    %90 = vmatpush1.msra.mxu0 0.0
    %91 = vmatprep.subr.mxu0 0.0
    %92 = vmatpush1.msra.mxu0 0.0
    %93 = vmatprep.subr.mxu0 0.0
    %94 = vmatpush1.msra.mxu0 0.0
    %95 = vmatprep.subr.mxu0 0.0
    %96 = vmatpush1.msra.mxu0 0.0
    %97 = vmatprep.subr.mxu0 0.0
    %98 = vmatpush1.msra.mxu0 0.0
    %99 = vmatprep.subr.mxu0 0.0
    %100 = vmatpush1.msra.mxu0 0.0
    %101 = vmatprep.subr.mxu0 0.0
    %102 = vmatpush1.msra.mxu0 0.0
    %103 = vmatprep.subr.mxu0 0.0
    %104 = vmatpush1.msra.mxu0 0.0
    %105 = vmatprep.subr.mxu0 0.0
    %106 = vmatpush1.msra.mxu0 0.0
    %107 = vmatprep.subr.mxu0 0.0
    %108 = vmatpush1.msra.mxu0 0.0
    %109 = vmatprep.subr.mxu0 0.0
    %110 = vmatpush1.msra.mxu0 0.0
    %111 = vmatprep.subr.mxu0 0.0
    %112 = vmatpush1.msra.mxu0 0.0
    %113 = vmatprep.subr.mxu0 0.0
    %114 = vmatpush1.msra.mxu0 0.0
    %115 = vmatprep.subr.mxu0 0.0
    %116 = vmatpush1.msra.mxu0 0.0
    %117 = vmatprep.subr.mxu0 0.0
    %118 = vmatpush1.msra.mxu0 0.0
    %119 = vmatprep.subr.mxu0 0.0
    %120 = vmatpush1.msra.mxu0 0.0
    %121 = vmatprep.subr.mxu0 0.0
    %122 = vmatpush1.msra.mxu0 0.0
    %123 = vmatprep.subr.mxu0 0.0
    %124 = vmatpush1.msra.mxu0 0.0
    %125 = vmatprep.subr.mxu0 0.0
    %126 = vmatpush1.msra.mxu0 0.0
    %127 = vmatprep.mubr.f32.mxu0 0.0
    %128 = vmatmul.mubr.f32.gmra.mrb[0].mxu0 %v58
    %v129 = vpop.f32.mrb[0].mxu0
    %v130 = vadd.f32 %v54, %v129
    %v131 = vpop.f32.mrb[0].mxu0
    %132 = vmatprep.mubr.f32.mxu0 0.0
    %133 = vmatmul.mubr.f32.gmra.mrb[0].mxu0 %v61
    %v134 = vpop.f32.mrb[0].mxu0
    %v135 = vadd.f32 %v54, %v134
    %v136 = vpop.f32.mrb[0].mxu0
    %137 = vdwg.mxu0
    %vm138 = vcmask 785408
    %139 = vst.msk [vmem:[#allocation7] sm:$0xff] %vm138, %v130
    %140 = vst.msk [vmem:[#allocation7 + $0x8] sm:$0xff] %vm138, %v135
    // Predicated region
    $region22: #{tpu_custom_call.1} parent=1 // pred_check
      _
    $region23: #{tpu_custom_call.1} parent=1 // pred_check_branch
      %142 = sbr.rel (0) target = $region25
    $region24: #{tpu_custom_call.1} parent=1 // pred_region
      %s144 = ssub.s32 256, 256
      %145 = vsyncadd [#allocation4], %s144
      %s146 = sshll.u32 [#allocation7], 4
      %s147 = int_to_ptr.vmem [resolvable:$true] %s146
      %152 = dma.vmem_to_hbm [thread:$0]  %s147, 256, %s3, [#allocation4], 128, 128, 8
    $region25: #{tpu_custom_call.1} parent=1 // pred_fallthru
      _
    // Predicated region
    $region26: #{tpu_custom_call.1} parent=1 // pred_check
      _
    $region27: #{tpu_custom_call.1} parent=1 // pred_check_branch
      %154 = sbr.rel (0) target = $region29
    $region28: #{tpu_custom_call.1} parent=1 // pred_region
      %155 = dma.done [#allocation4], 256
    $region29: #{tpu_custom_call.1} parent=1 // pred_fallthru
      _
    %156 = vsyncpa [#allocation3], 1
    %157 = vsyncpa [#allocation6], 1
    %158 = vsyncpa [#allocation4], 1

</llo_original>
